<compile_context>
chip_gen: v7x
topology: tpu7x:2x2x1
jax: 0.10.0
libtpu: 0.0.40
codegen_flags: <defaults>
</compile_context>

<pallas_src>
import jax
import jax.numpy as jnp
from jax.experimental import pallas as pl
from jax.experimental.pallas import tpu as pltpu


def cond_generator_kernel(noise_ref, label_ref, w1n_ref, w1l_ref, b1_ref,
                          w2_ref, b2_ref, o_ref):
    # noise_ref: [TB, NOISE] f32     label_ref: [TB, LABEL] f32
    # w1n_ref:   [NOISE, H]  bf16    w1l_ref:   [LABEL, H]  bf16
    # b1_ref:    [1, H]      f32
    # w2_ref:    [H, O]      bf16    b2_ref:    [1, O]      f32
    # o_ref:     [TB, O]     f32
    n = noise_ref[...].astype(jnp.bfloat16)
    l = label_ref[...].astype(jnp.bfloat16)

    # fc1: fused "concat" via split weights, f32 accumulation on the MXU.
    h = jnp.dot(n, w1n_ref[...], preferred_element_type=jnp.float32)
    h = h + jnp.dot(l, w1l_ref[...], preferred_element_type=jnp.float32)
    h = h + b1_ref[...]

    # LeakyReLU(negative_slope=0.2) in f32 on the VPU.
    h = jnp.where(h > 0, h, 0.2 * h)

    # fc2: bf16 operands, f32 accumulation.
    y = jnp.dot(h.astype(jnp.bfloat16), w2_ref[...],
                preferred_element_type=jnp.float32)
    y = y + b2_ref[...]
    o_ref[...] = y.astype(o_ref.dtype)


def _pick_batch_tile(B):
    # Largest tile (multiple of 8 sublanes) that evenly divides B; else one tile.
    for tb in (1024, 512, 256, 128, 64, 32, 16, 8):
        if B % tb == 0:
            return tb
    return B


def conditional_generator(noise, label, w1, b1, w2, b2):
    """Pallas forward pass of ConditionalGenerator.

    noise: [B, NOISE] f32, label: [B, LABEL] f32
    w1: [NOISE+LABEL, H], b1: [H]
    w2: [H, O],           b2: [O]
    """
    B, NOISE = noise.shape
    _, LABEL = label.shape
    H = w1.shape[1]
    O = w2.shape[1]

    # Split W1 so the concat never materializes; cast weights to bf16 once.
    w1n = w1[:NOISE].astype(jnp.bfloat16)
    w1l = w1[NOISE:].astype(jnp.bfloat16)
    w2b = w2.astype(jnp.bfloat16)
    b1_2d = b1.reshape(1, H).astype(jnp.float32)
    b2_2d = b2.reshape(1, O).astype(jnp.float32)

    TB = _pick_batch_tile(B)
    grid = (B // TB,)

    # TODO(synk): for production sizes (H, O >= 2048) on v7x (64 MiB VMEM), also
    # tile W2's output (N) dim or raise vmem_limit_bytes; unnecessary at demo sizes.
    return pl.pallas_call(
        cond_generator_kernel,
        out_shape=jax.ShapeDtypeStruct((B, O), jnp.float32),
        grid=grid,
        in_specs=[
            pl.BlockSpec((TB, NOISE), lambda i: (i, 0)),   # noise tile
            pl.BlockSpec((TB, LABEL), lambda i: (i, 0)),   # label tile
            pl.BlockSpec((NOISE, H), lambda i: (0, 0)),    # W1 (noise rows), resident
            pl.BlockSpec((LABEL, H), lambda i: (0, 0)),    # W1 (label rows), resident
            pl.BlockSpec((1, H), lambda i: (0, 0)),        # b1, resident
            pl.BlockSpec((H, O), lambda i: (0, 0)),        # W2, resident
            pl.BlockSpec((1, O), lambda i: (0, 0)),        # b2, resident
        ],
        out_specs=pl.BlockSpec((TB, O), lambda i: (i, 0)),
        compiler_params=pltpu.CompilerParams(
            dimension_semantics=("parallel",)),
    )(noise, label, w1n, w1l, b1_2d, w2b, b2_2d)


if __name__ == "__main__":
    # Small but lane-dense shapes (128-multiples) consistent with the module
    # (defaults are 768; scaled down while keeping MXU/vreg-friendly widths).
    B = 256          # batch (tiled into 128-row blocks -> grid=(2,))
    NOISE = 128      # noise_size
    LABEL = 128      # label_size
    HIDDEN = 128     # hidden_size
    OUTPUT = 128     # output_size

    key = jax.random.PRNGKey(0)
    k_noise, k_label, k_w1, k_b1, k_w2, k_b2 = jax.random.split(key, 6)

    noise = jax.random.normal(k_noise, (B, NOISE), dtype=jnp.float32)
    label = jax.random.normal(k_label, (B, LABEL), dtype=jnp.float32)

    # Deterministic synthetic parameters (not a checkpoint load).
    w1 = jax.random.normal(k_w1, (NOISE + LABEL, HIDDEN), dtype=jnp.float32) * 0.02
    b1 = jax.random.normal(k_b1, (HIDDEN,), dtype=jnp.float32) * 0.02
    w2 = jax.random.normal(k_w2, (HIDDEN, OUTPUT), dtype=jnp.float32) * 0.02
    b2 = jax.random.normal(k_b2, (OUTPUT,), dtype=jnp.float32) * 0.02

    out = conditional_generator(noise, label, w1, b1, w2, b2)
    out = jax.block_until_ready(out)
    assert out.shape == (B, OUTPUT)

    # Reference mirroring the kernel math (bf16 operands, f32 accumulation).
    w1n = w1[:NOISE].astype(jnp.bfloat16)
    w1l = w1[NOISE:].astype(jnp.bfloat16)
    h = (jnp.dot(noise.astype(jnp.bfloat16), w1n, preferred_element_type=jnp.float32)
         + jnp.dot(label.astype(jnp.bfloat16), w1l, preferred_element_type=jnp.float32)
         + b1)
    h = jnp.where(h > 0, h, 0.2 * h)
    ref = (jnp.dot(h.astype(jnp.bfloat16), w2.astype(jnp.bfloat16),
                   preferred_element_type=jnp.float32) + b2)
    assert jnp.allclose(out, ref, atol=2e-2, rtol=2e-2), (
        float(jnp.max(jnp.abs(out - ref))))

    # Sanity vs the pure-f32 PyTorch-equivalent math (loose tol: bf16 operands).
    xf = jnp.concatenate([noise, label], axis=-1)
    hf = xf @ w1 + b1
    hf = jnp.where(hf > 0, hf, 0.2 * hf)
    reff = hf @ w2 + b2
    assert jnp.allclose(out, reff, atol=5e-2, rtol=5e-2)

    print("KERNEL_OK")
</pallas_src>

<mosaic_0001>
module attributes {stable_mosaic.version = 11 : i64} {
  func.func @cond_generator_kernel(%arg0: i32, %arg1: memref<256x128xf32, #tpu.memory_space<vmem>>, %arg2: memref<256x128xf32, #tpu.memory_space<vmem>>, %arg3: memref<128x128xbf16, #tpu.memory_space<vmem>>, %arg4: memref<128x128xbf16, #tpu.memory_space<vmem>>, %arg5: memref<1x128xf32, #tpu.memory_space<vmem>>, %arg6: memref<128x128xbf16, #tpu.memory_space<vmem>>, %arg7: memref<1x128xf32, #tpu.memory_space<vmem>>, %arg8: memref<256x128xf32, #tpu.memory_space<vmem>>) attributes {dimension_semantics = [#tpu.dimension_semantics<parallel>], iteration_bounds = array<i64: 1>, scalar_prefetch = 0 : i64, scratch_operands = 0 : i64, tpu.core_type = #tpu.core_type<tc>, window_params = [{transform_indices = @transform_0, window_bounds = array<i64: 256, 128>}, {transform_indices = @transform_1, window_bounds = array<i64: 256, 128>}, {pipeline_mode = #tpu.pipeline_mode<synchronous>, transform_indices = @transform_2, window_bounds = array<i64: 128, 128>}, {pipeline_mode = #tpu.pipeline_mode<synchronous>, transform_indices = @transform_3, window_bounds = array<i64: 128, 128>}, {pipeline_mode = #tpu.pipeline_mode<synchronous>, transform_indices = @transform_4, window_bounds = array<i64: 1, 128>}, {pipeline_mode = #tpu.pipeline_mode<synchronous>, transform_indices = @transform_5, window_bounds = array<i64: 128, 128>}, {pipeline_mode = #tpu.pipeline_mode<synchronous>, transform_indices = @transform_6, window_bounds = array<i64: 1, 128>}, {transform_indices = @transform_7, window_bounds = array<i64: 256, 128>}]} {
    %c0 = arith.constant 0 : index
    %c0_0 = arith.constant 0 : index
    %0 = vector.load %arg1[%c0, %c0_0] : memref<256x128xf32, #tpu.memory_space<vmem>>, vector<256x128xf32>
    %1 = arith.truncf %0 : vector<256x128xf32> to vector<256x128xbf16>
    %c0_1 = arith.constant 0 : index
    %c0_2 = arith.constant 0 : index
    %2 = vector.load %arg2[%c0_1, %c0_2] : memref<256x128xf32, #tpu.memory_space<vmem>>, vector<256x128xf32>
    %3 = arith.truncf %2 : vector<256x128xf32> to vector<256x128xbf16>
    %c0_3 = arith.constant 0 : index
    %c0_4 = arith.constant 0 : index
    %4 = vector.load %arg3[%c0_3, %c0_4] : memref<128x128xbf16, #tpu.memory_space<vmem>>, vector<128x128xbf16>
    %cst = arith.constant dense<0.000000e+00> : vector<256x128xf32>
    %5 = tpu.matmul %1, %4, %cst {dimension_numbers = #tpu.dot_dimension_numbers<[1], [0], [0], [1], [0, 0, 1, 1], [], []>} : vector<256x128xbf16>, vector<128x128xbf16>, vector<256x128xf32> -> vector<256x128xf32>
    %c0_5 = arith.constant 0 : index
    %c0_6 = arith.constant 0 : index
    %6 = vector.load %arg4[%c0_5, %c0_6] : memref<128x128xbf16, #tpu.memory_space<vmem>>, vector<128x128xbf16>
    %cst_7 = arith.constant dense<0.000000e+00> : vector<256x128xf32>
    %7 = tpu.matmul %3, %6, %cst_7 {dimension_numbers = #tpu.dot_dimension_numbers<[1], [0], [0], [1], [0, 0, 1, 1], [], []>} : vector<256x128xbf16>, vector<128x128xbf16>, vector<256x128xf32> -> vector<256x128xf32>
    %8 = arith.addf %5, %7 : vector<256x128xf32>
    %c0_8 = arith.constant 0 : index
    %c0_9 = arith.constant 0 : index
    %9 = vector.load %arg5[%c0_8, %c0_9] : memref<1x128xf32, #tpu.memory_space<vmem>>, vector<1x128xf32>
    %10 = vector.broadcast %9 : vector<1x128xf32> to vector<256x128xf32>
    %11 = arith.addf %8, %10 : vector<256x128xf32>
    %cst_10 = arith.constant 0.000000e+00 : f32
    %12 = vector.broadcast %cst_10 : f32 to vector<256x128xf32>
    %13 = arith.cmpf ogt, %11, %12 : vector<256x128xf32>
    %cst_11 = arith.constant 2.000000e-01 : f32
    %14 = vector.broadcast %cst_11 : f32 to vector<256x128xf32>
    %15 = arith.mulf %14, %11 : vector<256x128xf32>
    %16 = arith.select %13, %11, %15 : vector<256x128xi1>, vector<256x128xf32>
    %17 = arith.truncf %16 : vector<256x128xf32> to vector<256x128xbf16>
    %c0_12 = arith.constant 0 : index
    %c0_13 = arith.constant 0 : index
    %18 = vector.load %arg6[%c0_12, %c0_13] : memref<128x128xbf16, #tpu.memory_space<vmem>>, vector<128x128xbf16>
    %cst_14 = arith.constant dense<0.000000e+00> : vector<256x128xf32>
    %19 = tpu.matmul %17, %18, %cst_14 {dimension_numbers = #tpu.dot_dimension_numbers<[1], [0], [0], [1], [0, 0, 1, 1], [], []>} : vector<256x128xbf16>, vector<128x128xbf16>, vector<256x128xf32> -> vector<256x128xf32>
    %c0_15 = arith.constant 0 : index
    %c0_16 = arith.constant 0 : index
    %20 = vector.load %arg7[%c0_15, %c0_16] : memref<1x128xf32, #tpu.memory_space<vmem>>, vector<1x128xf32>
    %21 = vector.broadcast %20 : vector<1x128xf32> to vector<256x128xf32>
    %22 = arith.addf %19, %21 : vector<256x128xf32>
    %c0_17 = arith.constant 0 : index
    %c0_18 = arith.constant 0 : index
    %23 = vector.load %arg8[%c0_17, %c0_18] : memref<256x128xf32, #tpu.memory_space<vmem>>, vector<256x128xf32>
    tpu.vector_store %arg8[%c0_17, %c0_18], %22 {strides = array<i32>} : memref<256x128xf32, #tpu.memory_space<vmem>>, vector<256x128xf32>,
    return
  }
  func.func @transform_0(%arg0: i32) -> (i32, i32) {
    %c0_i32 = arith.constant 0 : i32
    %c0_i32_0 = arith.constant 0 : i32
    return %arg0, %c0_i32 : i32, i32
  }
  func.func @transform_1(%arg0: i32) -> (i32, i32) {
    %c0_i32 = arith.constant 0 : i32
    %c0_i32_0 = arith.constant 0 : i32
    return %arg0, %c0_i32 : i32, i32
  }
  func.func @transform_2(%arg0: i32) -> (i32, i32) {
    %c0_i32 = arith.constant 0 : i32
    %c0_i32_0 = arith.constant 0 : i32
    %c0_i32_1 = arith.constant 0 : i32
    return %c0_i32, %c0_i32_0 : i32, i32
  }
  func.func @transform_3(%arg0: i32) -> (i32, i32) {
    %c0_i32 = arith.constant 0 : i32
    %c0_i32_0 = arith.constant 0 : i32
    %c0_i32_1 = arith.constant 0 : i32
    return %c0_i32, %c0_i32_0 : i32, i32
  }
  func.func @transform_4(%arg0: i32) -> (i32, i32) {
    %c0_i32 = arith.constant 0 : i32
    %c0_i32_0 = arith.constant 0 : i32
    %c0_i32_1 = arith.constant 0 : i32
    return %c0_i32, %c0_i32_0 : i32, i32
  }
  func.func @transform_5(%arg0: i32) -> (i32, i32) {
    %c0_i32 = arith.constant 0 : i32
    %c0_i32_0 = arith.constant 0 : i32
    %c0_i32_1 = arith.constant 0 : i32
    return %c0_i32, %c0_i32_0 : i32, i32
  }
  func.func @transform_6(%arg0: i32) -> (i32, i32) {
    %c0_i32 = arith.constant 0 : i32
    %c0_i32_0 = arith.constant 0 : i32
    %c0_i32_1 = arith.constant 0 : i32
    return %c0_i32, %c0_i32_0 : i32, i32
  }
  func.func @transform_7(%arg0: i32) -> (i32, i32) {
    %c0_i32 = arith.constant 0 : i32
    %c0_i32_0 = arith.constant 0 : i32
    return %arg0, %c0_i32 : i32, i32
  }
}

</mosaic_0001>

<llo_original>
// kernel: tpu_custom_call.1
$region0: #{tpu_custom_call.1}
  #allocation0 [shape = 'u32[]', space=smem, size = 0x4, offset = 0x4, fixed_abs, tag = 'smem constant byte address 0x4 - core index']
  #allocation1 [shape = 'u32[144,128]{1,0:T(1,128)}', space=vmem, size = 0x12000, scoped, tag = 'internal scratch']
  %s0 = inlined_call_operand.hbm [shape: f32[256,128], index: 0, kind: input, shape index: {}]
  %s1 = inlined_call_operand.hbm [shape: f32[256,128], index: 1, kind: input, shape index: {}]
  %s2 = inlined_call_operand.hbm [shape: bf16[128,128], index: 2, kind: input, shape index: {}]
  %s3 = inlined_call_operand.hbm [shape: bf16[128,128], index: 3, kind: input, shape index: {}]
  %s4 = inlined_call_operand.vmem [shape: f32[1,128], index: 4, kind: input, shape index: {}]
  %s5 = inlined_call_operand.hbm [shape: bf16[128,128], index: 5, kind: input, shape index: {}]
  %s6 = inlined_call_operand.vmem [shape: f32[1,128], index: 6, kind: input, shape index: {}]
  %s7 = inlined_call_operand.hbm [shape: f32[256,128], index: 7, kind: output, shape index: {}]
  %s8 = sld [smem:[#allocation0]]
  $region58: #{tpu_custom_call.1} parent=0
    _
  %s10 = ssub.s32 1, %s8
  %s11 = scalar_select 0, %s10, %s8
  $region1: #{tpu_custom_call.1} parent=0
    #allocation2 [shape = 'u8[131072]{0}', space=vmem, size = 0x20000, scoped, tag = 'input window, operand 0, single buffered']
    #allocation3 [shape = 's32[1]{0}', space=sflag, size = 0x4, scoped, tag = 'scoped memory for tpu_custom_call.1']
    #allocation4 [shape = 's32[1]{0}', space=sflag, size = 0x4, scoped, tag = 'scoped memory for tpu_custom_call.1']
    #allocation5 [shape = 'u8[131072]{0}', space=vmem, size = 0x20000, scoped, tag = 'input window, operand 1, single buffered']
    #allocation6 [shape = 's32[1]{0}', space=sflag, size = 0x4, scoped, tag = 'scoped memory for tpu_custom_call.1']
    #allocation7 [shape = 'u8[32768]{0}', space=vmem, size = 0x8000, scoped, tag = 'input window, operand 2, single buffered']
    #allocation8 [shape = 'u8[32768]{0}', space=vmem, size = 0x8000, scoped, tag = 'input window, operand 3, single buffered']
    #allocation9 [shape = 's32[1]{0}', space=sflag, size = 0x4, scoped, tag = 'scoped memory for tpu_custom_call.1']
    #allocation10 [shape = 'u8[32768]{0}', space=vmem, size = 0x8000, scoped, tag = 'input window, operand 5, single buffered']
    #allocation11 [shape = 'u8[131072]{0}', space=vmem, size = 0x20000, scoped, tag = 'output window, operand 0, single buffered']
    %12 = vsyncpa [#allocation3], 0
    %13 = vsyncpa [#allocation6], 0
    %14 = vsyncpa [#allocation9], 0
    %15 = vsyncpa [#allocation4], 0
    // Predicated region
    $region2: #{tpu_custom_call.1} parent=1 // pred_check
      _
    $region3: #{tpu_custom_call.1} parent=1 // pred_check_branch
      %17 = sbr.rel (0) target = $region5
    $region4: #{tpu_custom_call.1} parent=1 // pred_region
      %s19 = ssub.s32 4096, 4096
      %20 = vsyncadd [#allocation3], %s19
      %s21 = sshll.u32 [#allocation2], 4
      %s22 = int_to_ptr.vmem [resolvable:$true] %s21
      %27 = dma.hbm_to_vmem [thread:$0]  %s0, 4096, %s22, [#allocation3], 128, 128, 8
    $region5: #{tpu_custom_call.1} parent=1 // pred_fallthru
      _
    // Predicated region
    $region6: #{tpu_custom_call.1} parent=1 // pred_check
      _
    $region7: #{tpu_custom_call.1} parent=1 // pred_check_branch
      %29 = sbr.rel (0) target = $region9
    $region8: #{tpu_custom_call.1} parent=1 // pred_region
      %s31 = ssub.s32 4096, 4096
      %32 = vsyncadd [#allocation6], %s31
      %s33 = sshll.u32 [#allocation5], 4
      %s34 = int_to_ptr.vmem [resolvable:$true] %s33
      %39 = dma.hbm_to_vmem [thread:$0]  %s1, 4096, %s34, [#allocation6], 128, 128, 8
    $region9: #{tpu_custom_call.1} parent=1 // pred_fallthru
      _
    // Predicated region
    $region10: #{tpu_custom_call.1} parent=1 // pred_check
      _
    $region11: #{tpu_custom_call.1} parent=1 // pred_check_branch
      %41 = sbr.rel (0) target = $region13
    $region12: #{tpu_custom_call.1} parent=1 // pred_region
      %s43 = ssub.s32 1024, 1024
      %44 = vsyncadd [#allocation6], %s43
      %s45 = sshll.u32 [#allocation7], 4
      %s46 = int_to_ptr.vmem [resolvable:$true] %s45
      %51 = dma.hbm_to_vmem [thread:$0]  %s2, 1024, %s46, [#allocation6], 64, 64, 4
    $region13: #{tpu_custom_call.1} parent=1 // pred_fallthru
      _
    // Predicated region
    $region14: #{tpu_custom_call.1} parent=1 // pred_check
      _
    $region15: #{tpu_custom_call.1} parent=1 // pred_check_branch
      %53 = sbr.rel (0) target = $region17
    $region16: #{tpu_custom_call.1} parent=1 // pred_region
      %s55 = ssub.s32 1024, 1024
      %56 = vsyncadd [#allocation9], %s55
      %s57 = sshll.u32 [#allocation8], 4
      %s58 = int_to_ptr.vmem [resolvable:$true] %s57
      %63 = dma.hbm_to_vmem [thread:$0]  %s3, 1024, %s58, [#allocation9], 64, 64, 4
    $region17: #{tpu_custom_call.1} parent=1 // pred_fallthru
      _
    // Predicated region
    $region18: #{tpu_custom_call.1} parent=1 // pred_check
      _
    $region19: #{tpu_custom_call.1} parent=1 // pred_check_branch
      %65 = sbr.rel (0) target = $region21
    $region20: #{tpu_custom_call.1} parent=1 // pred_region
      _
    $region21: #{tpu_custom_call.1} parent=1 // pred_fallthru
      _
    // Predicated region
    $region22: #{tpu_custom_call.1} parent=1 // pred_check
      _
    $region23: #{tpu_custom_call.1} parent=1 // pred_check_branch
      %67 = sbr.rel (0) target = $region25
    $region24: #{tpu_custom_call.1} parent=1 // pred_region
      %s69 = ssub.s32 1024, 1024
      %70 = vsyncadd [#allocation9], %s69
      %s71 = sshll.u32 [#allocation10], 4
      %s72 = int_to_ptr.vmem [resolvable:$true] %s71
      %77 = dma.hbm_to_vmem [thread:$0]  %s5, 1024, %s72, [#allocation9], 64, 64, 4
    $region25: #{tpu_custom_call.1} parent=1 // pred_fallthru
      _
    // Predicated region
    $region26: #{tpu_custom_call.1} parent=1 // pred_check
      _
    $region27: #{tpu_custom_call.1} parent=1 // pred_check_branch
      %79 = sbr.rel (0) target = $region29
    $region28: #{tpu_custom_call.1} parent=1 // pred_region
      _
    $region29: #{tpu_custom_call.1} parent=1 // pred_fallthru
      _
    // Predicated region
    $region30: #{tpu_custom_call.1} parent=1 // pred_check
      _
    $region31: #{tpu_custom_call.1} parent=1 // pred_check_branch
      %81 = sbr.rel (0) target = $region33
    $region32: #{tpu_custom_call.1} parent=1 // pred_region
      %82 = dma.done [#allocation3], 4096
    $region33: #{tpu_custom_call.1} parent=1 // pred_fallthru
      _
    // Predicated region
    $region34: #{tpu_custom_call.1} parent=1 // pred_check
      _
    $region35: #{tpu_custom_call.1} parent=1 // pred_check_branch
      %84 = sbr.rel (0) target = $region37
    $region36: #{tpu_custom_call.1} parent=1 // pred_region
      %85 = dma.done [#allocation6], 4096
    $region37: #{tpu_custom_call.1} parent=1 // pred_fallthru
      _
    // Predicated region
    $region38: #{tpu_custom_call.1} parent=1 // pred_check
      _
    $region39: #{tpu_custom_call.1} parent=1 // pred_check_branch
      %87 = sbr.rel (0) target = $region41
    $region40: #{tpu_custom_call.1} parent=1 // pred_region
      %88 = dma.done [#allocation6], 1024
    $region41: #{tpu_custom_call.1} parent=1 // pred_fallthru
      _
    // Predicated region
    $region42: #{tpu_custom_call.1} parent=1 // pred_check
      _
    $region43: #{tpu_custom_call.1} parent=1 // pred_check_branch
      %90 = sbr.rel (0) target = $region45
    $region44: #{tpu_custom_call.1} parent=1 // pred_region
      %91 = dma.done [#allocation9], 1024
    $region45: #{tpu_custom_call.1} parent=1 // pred_fallthru
      _
    // Predicated region
    $region46: #{tpu_custom_call.1} parent=1 // pred_check
      _
    $region47: #{tpu_custom_call.1} parent=1 // pred_check_branch
      %93 = sbr.rel (0) target = $region49
    $region48: #{tpu_custom_call.1} parent=1 // pred_region
      %94 = dma.done [#allocation9], 1024
    $region49: #{tpu_custom_call.1} parent=1 // pred_fallthru
      _
    %v96 = vld [vmem:[#allocation2] sm:$0xff]
    %v97 = vld [vmem:[#allocation2 + $0x8] sm:$0xff]
    %v98 = vld [vmem:[#allocation2 + $0x10] sm:$0xff]
    %v99 = vld [vmem:[#allocation2 + $0x18] sm:$0xff]
    %v100 = vld [vmem:[#allocation2 + $0x20] sm:$0xff]
    %v101 = vld [vmem:[#allocation2 + $0x28] sm:$0xff]
    %v102 = vld [vmem:[#allocation2 + $0x30] sm:$0xff]
    %v103 = vld [vmem:[#allocation2 + $0x38] sm:$0xff]
    %v104 = vld [vmem:[#allocation2 + $0x40] sm:$0xff]
    %v105 = vld [vmem:[#allocation2 + $0x48] sm:$0xff]
    %v106 = vld [vmem:[#allocation2 + $0x50] sm:$0xff]
    %v107 = vld [vmem:[#allocation2 + $0x58] sm:$0xff]
    %v108 = vld [vmem:[#allocation2 + $0x60] sm:$0xff]
    %v109 = vld [vmem:[#allocation2 + $0x68] sm:$0xff]
    %v110 = vld [vmem:[#allocation2 + $0x70] sm:$0xff]
    %v111 = vld [vmem:[#allocation2 + $0x78] sm:$0xff]
    %v112 = vld [vmem:[#allocation2 + $0x80] sm:$0xff]
    %v113 = vld [vmem:[#allocation2 + $0x88] sm:$0xff]
    %v114 = vld [vmem:[#allocation2 + $0x90] sm:$0xff]
    %v115 = vld [vmem:[#allocation2 + $0x98] sm:$0xff]
    %v116 = vld [vmem:[#allocation2 + $0xa0] sm:$0xff]
    %v117 = vld [vmem:[#allocation2 + $0xa8] sm:$0xff]
    %v118 = vld [vmem:[#allocation2 + $0xb0] sm:$0xff]
    %v119 = vld [vmem:[#allocation2 + $0xb8] sm:$0xff]
    %v120 = vld [vmem:[#allocation2 + $0xc0] sm:$0xff]
    %v121 = vld [vmem:[#allocation2 + $0xc8] sm:$0xff]
    %v122 = vld [vmem:[#allocation2 + $0xd0] sm:$0xff]
    %v123 = vld [vmem:[#allocation2 + $0xd8] sm:$0xff]
    %v124 = vld [vmem:[#allocation2 + $0xe0] sm:$0xff]
    %v125 = vld [vmem:[#allocation2 + $0xe8] sm:$0xff]
    %v126 = vld [vmem:[#allocation2 + $0xf0] sm:$0xff]
    %v127 = vld [vmem:[#allocation2 + $0xf8] sm:$0xff]
    %v128 = vpack.c.bf16 %v97, %v96
    %v129 = vpack.c.bf16 %v99, %v98
    %v130 = vpack.c.bf16 %v101, %v100
    %v131 = vpack.c.bf16 %v103, %v102
    %v132 = vpack.c.bf16 %v105, %v104
    %v133 = vpack.c.bf16 %v107, %v106
    %v134 = vpack.c.bf16 %v109, %v108
    %v135 = vpack.c.bf16 %v111, %v110
    %v136 = vpack.c.bf16 %v113, %v112
    %v137 = vpack.c.bf16 %v115, %v114
    %v138 = vpack.c.bf16 %v117, %v116
    %v139 = vpack.c.bf16 %v119, %v118
    %v140 = vpack.c.bf16 %v121, %v120
    %v141 = vpack.c.bf16 %v123, %v122
    %v142 = vpack.c.bf16 %v125, %v124
    %v143 = vpack.c.bf16 %v127, %v126
    %v144 = vld [vmem:[#allocation5] sm:$0xff]
    %v145 = vld [vmem:[#allocation5 + $0x8] sm:$0xff]
    %v146 = vld [vmem:[#allocation5 + $0x10] sm:$0xff]
    %v147 = vld [vmem:[#allocation5 + $0x18] sm:$0xff]
    %v148 = vld [vmem:[#allocation5 + $0x20] sm:$0xff]
    %v149 = vld [vmem:[#allocation5 + $0x28] sm:$0xff]
    %v150 = vld [vmem:[#allocation5 + $0x30] sm:$0xff]
    %v151 = vld [vmem:[#allocation5 + $0x38] sm:$0xff]
    %v152 = vld [vmem:[#allocation5 + $0x40] sm:$0xff]
    %v153 = vld [vmem:[#allocation5 + $0x48] sm:$0xff]
    %v154 = vld [vmem:[#allocation5 + $0x50] sm:$0xff]
    %v155 = vld [vmem:[#allocation5 + $0x58] sm:$0xff]
    %v156 = vld [vmem:[#allocation5 + $0x60] sm:$0xff]
    %v157 = vld [vmem:[#allocation5 + $0x68] sm:$0xff]
    %v158 = vld [vmem:[#allocation5 + $0x70] sm:$0xff]
    %v159 = vld [vmem:[#allocation5 + $0x78] sm:$0xff]
    %v160 = vld [vmem:[#allocation5 + $0x80] sm:$0xff]
    %v161 = vld [vmem:[#allocation5 + $0x88] sm:$0xff]
    %v162 = vld [vmem:[#allocation5 + $0x90] sm:$0xff]
    %v163 = vld [vmem:[#allocation5 + $0x98] sm:$0xff]
    %v164 = vld [vmem:[#allocation5 + $0xa0] sm:$0xff]
    %v165 = vld [vmem:[#allocation5 + $0xa8] sm:$0xff]
    %v166 = vld [vmem:[#allocation5 + $0xb0] sm:$0xff]
    %v167 = vld [vmem:[#allocation5 + $0xb8] sm:$0xff]
    %v168 = vld [vmem:[#allocation5 + $0xc0] sm:$0xff]
    %v169 = vld [vmem:[#allocation5 + $0xc8] sm:$0xff]
    %v170 = vld [vmem:[#allocation5 + $0xd0] sm:$0xff]
    %v171 = vld [vmem:[#allocation5 + $0xd8] sm:$0xff]
    %v172 = vld [vmem:[#allocation5 + $0xe0] sm:$0xff]
    %v173 = vld [vmem:[#allocation5 + $0xe8] sm:$0xff]
    %v174 = vld [vmem:[#allocation5 + $0xf0] sm:$0xff]
    %v175 = vld [vmem:[#allocation5 + $0xf8] sm:$0xff]
    %v176 = vpack.c.bf16 %v145, %v144
    %v177 = vpack.c.bf16 %v147, %v146
    %v178 = vpack.c.bf16 %v149, %v148
    %v179 = vpack.c.bf16 %v151, %v150
    %v180 = vpack.c.bf16 %v153, %v152
    %v181 = vpack.c.bf16 %v155, %v154
    %v182 = vpack.c.bf16 %v157, %v156
    %v183 = vpack.c.bf16 %v159, %v158
    %v184 = vpack.c.bf16 %v161, %v160
    %v185 = vpack.c.bf16 %v163, %v162
    %v186 = vpack.c.bf16 %v165, %v164
    %v187 = vpack.c.bf16 %v167, %v166
    %v188 = vpack.c.bf16 %v169, %v168
    %v189 = vpack.c.bf16 %v171, %v170
    %v190 = vpack.c.bf16 %v173, %v172
    %v191 = vpack.c.bf16 %v175, %v174
    %v192 = vld [vmem:[#allocation7] sm:$0xf]
    %v193 = vld [vmem:[#allocation7 + $0x4] sm:$0xf]
    %v194 = vld [vmem:[#allocation7 + $0x8] sm:$0xf]
    %v195 = vld [vmem:[#allocation7 + $0xc] sm:$0xf]
    %v196 = vld [vmem:[#allocation7 + $0x10] sm:$0xf]
    %v197 = vld [vmem:[#allocation7 + $0x14] sm:$0xf]
    %v198 = vld [vmem:[#allocation7 + $0x18] sm:$0xf]
    %v199 = vld [vmem:[#allocation7 + $0x1c] sm:$0xf]
    %v200 = vld [vmem:[#allocation7 + $0x20] sm:$0xf]
    %v201 = vld [vmem:[#allocation7 + $0x24] sm:$0xf]
    %v202 = vld [vmem:[#allocation7 + $0x28] sm:$0xf]
    %v203 = vld [vmem:[#allocation7 + $0x2c] sm:$0xf]
    %v204 = vld [vmem:[#allocation7 + $0x30] sm:$0xf]
    %v205 = vld [vmem:[#allocation7 + $0x34] sm:$0xf]
    %v206 = vld [vmem:[#allocation7 + $0x38] sm:$0xf]
    %v207 = vld [vmem:[#allocation7 + $0x3c] sm:$0xf]
    %v208 = vld [vmem:[#allocation8] sm:$0xf]
    %v209 = vld [vmem:[#allocation8 + $0x4] sm:$0xf]
    %v210 = vld [vmem:[#allocation8 + $0x8] sm:$0xf]
    %v211 = vld [vmem:[#allocation8 + $0xc] sm:$0xf]
    %v212 = vld [vmem:[#allocation8 + $0x10] sm:$0xf]
    %v213 = vld [vmem:[#allocation8 + $0x14] sm:$0xf]
    %v214 = vld [vmem:[#allocation8 + $0x18] sm:$0xf]
    %v215 = vld [vmem:[#allocation8 + $0x1c] sm:$0xf]
    %v216 = vld [vmem:[#allocation8 + $0x20] sm:$0xf]
    %v217 = vld [vmem:[#allocation8 + $0x24] sm:$0xf]
    %v218 = vld [vmem:[#allocation8 + $0x28] sm:$0xf]
    %v219 = vld [vmem:[#allocation8 + $0x2c] sm:$0xf]
    %v220 = vld [vmem:[#allocation8 + $0x30] sm:$0xf]
    %v221 = vld [vmem:[#allocation8 + $0x34] sm:$0xf]
    %v222 = vld [vmem:[#allocation8 + $0x38] sm:$0xf]
    %v223 = vld [vmem:[#allocation8 + $0x3c] sm:$0xf]
    %v240 = vunpack.c.l.b16 %v208
    %v241 = vunpack.c.l.b16 %v209
    %v242 = vunpack.c.l.b16 %v210
    %v243 = vunpack.c.l.b16 %v211
    %v244 = vunpack.c.l.b16 %v212
    %v245 = vunpack.c.l.b16 %v213
    %v246 = vunpack.c.l.b16 %v214
    %v247 = vunpack.c.l.b16 %v215
    %v248 = vunpack.c.l.b16 %v216
    %v249 = vunpack.c.l.b16 %v217
    %v250 = vunpack.c.l.b16 %v218
    %v251 = vunpack.c.l.b16 %v219
    %v252 = vunpack.c.l.b16 %v220
    %v253 = vunpack.c.l.b16 %v221
    %v254 = vunpack.c.l.b16 %v222
    %v255 = vunpack.c.l.b16 %v223
    %v256 = vpack.c.b16 %v241, %v240
    %v257 = vpack.c.b16 %v243, %v242
    %v258 = vpack.c.b16 %v245, %v244
    %v259 = vpack.c.b16 %v247, %v246
    %v260 = vpack.c.b16 %v249, %v248
    %v261 = vpack.c.b16 %v251, %v250
    %v262 = vpack.c.b16 %v253, %v252
    %v263 = vpack.c.b16 %v255, %v254
    %272 = vmatprep.subr.bf16.mxu0 0
    %273 = vmatpush1.bf16.msra.mxu0 %v256
    %274 = vmatprep.subr.bf16.mxu0 0
    %275 = vmatpush1.bf16.msra.mxu0 %v257
    %276 = vmatprep.subr.bf16.mxu0 0
    %277 = vmatpush1.bf16.msra.mxu0 %v258
    %278 = vmatprep.subr.bf16.mxu0 0
    %279 = vmatpush1.bf16.msra.mxu0 %v259
    %280 = vmatprep.subr.bf16.mxu0 0
    %281 = vmatpush1.bf16.msra.mxu0 %v260
    %282 = vmatprep.subr.bf16.mxu0 0
    %283 = vmatpush1.bf16.msra.mxu0 %v261
    %284 = vmatprep.subr.bf16.mxu0 0
    %285 = vmatpush1.bf16.msra.mxu0 %v262
    %286 = vmatprep.subr.bf16.mxu0 0
    %287 = vmatpush1.bf16.msra.mxu0 %v263
    %288 = vmatprep.subr.bf16.mxu0 0
    %289 = vmatpush1.bf16.msra.mxu0 0
    %290 = vmatprep.subr.bf16.mxu0 0
    %291 = vmatpush1.bf16.msra.mxu0 0
    %292 = vmatprep.subr.bf16.mxu0 0
    %293 = vmatpush1.bf16.msra.mxu0 0
    %294 = vmatprep.subr.bf16.mxu0 0
    %295 = vmatpush1.bf16.msra.mxu0 0
    %296 = vmatprep.subr.bf16.mxu0 0
    %297 = vmatpush1.bf16.msra.mxu0 0
    %298 = vmatprep.subr.bf16.mxu0 0
    %299 = vmatpush1.bf16.msra.mxu0 0
    %300 = vmatprep.subr.bf16.mxu0 0
    %301 = vmatpush1.bf16.msra.mxu0 0
    %302 = vmatprep.subr.bf16.mxu0 0
    %303 = vmatpush1.bf16.msra.mxu0 0
    %304 = vmatprep.mubr.bf16.mxu0 0
    %305 = vmatmul.mubr.bf16.gmra.mrb[0].mxu0 %v176
    %v306 = vpop.f32.mrb[0].mxu0
    %v307 = vadd.f32 0.0, %v306
    %v308 = vpop.f32.mrb[0].mxu0
    %v309 = vpop.f32.mrb[0].mxu0
    %v310 = vadd.f32 0.0, %v309
    %v311 = vpop.f32.mrb[0].mxu0
    %312 = vmatprep.mubr.bf16.mxu0 0
    %313 = vmatmul.mubr.bf16.gmra.mrb[0].mxu0 %v177
    %v314 = vpop.f32.mrb[0].mxu0
    %v315 = vadd.f32 0.0, %v314
    %v316 = vpop.f32.mrb[0].mxu0
    %v317 = vpop.f32.mrb[0].mxu0
    %v318 = vadd.f32 0.0, %v317
    %v319 = vpop.f32.mrb[0].mxu0
    %320 = vmatprep.mubr.bf16.mxu0 0
    %321 = vmatmul.mubr.bf16.gmra.mrb[0].mxu0 %v178
    %v322 = vpop.f32.mrb[0].mxu0
    %v323 = vadd.f32 0.0, %v322
    %v324 = vpop.f32.mrb[0].mxu0
    %v325 = vpop.f32.mrb[0].mxu0
    %v326 = vadd.f32 0.0, %v325
    %v327 = vpop.f32.mrb[0].mxu0
    %328 = vmatprep.mubr.bf16.mxu0 0
    %329 = vmatmul.mubr.bf16.gmra.mrb[0].mxu0 %v179
    %v330 = vpop.f32.mrb[0].mxu0
    %v331 = vadd.f32 0.0, %v330
    %v332 = vpop.f32.mrb[0].mxu0
    %v333 = vpop.f32.mrb[0].mxu0
    %v334 = vadd.f32 0.0, %v333
    %v335 = vpop.f32.mrb[0].mxu0
    %336 = vmatprep.mubr.bf16.mxu0 0
    %337 = vmatmul.mubr.bf16.gmra.mrb[0].mxu0 %v180
    %v338 = vpop.f32.mrb[0].mxu0
    %v339 = vadd.f32 0.0, %v338
    %v340 = vpop.f32.mrb[0].mxu0
    %v341 = vpop.f32.mrb[0].mxu0
    %v342 = vadd.f32 0.0, %v341
    %v343 = vpop.f32.mrb[0].mxu0
    %344 = vmatprep.mubr.bf16.mxu0 0
    %345 = vmatmul.mubr.bf16.gmra.mrb[0].mxu0 %v181
    %v346 = vpop.f32.mrb[0].mxu0
    %v347 = vadd.f32 0.0, %v346
    %v348 = vpop.f32.mrb[0].mxu0
    %v349 = vpop.f32.mrb[0].mxu0
    %v350 = vadd.f32 0.0, %v349
    %v351 = vpop.f32.mrb[0].mxu0
    %352 = vmatprep.mubr.bf16.mxu0 0
    %353 = vmatmul.mubr.bf16.gmra.mrb[0].mxu0 %v182
    %v354 = vpop.f32.mrb[0].mxu0
    %v355 = vadd.f32 0.0, %v354
    %v356 = vpop.f32.mrb[0].mxu0
    %v357 = vpop.f32.mrb[0].mxu0
    %v358 = vadd.f32 0.0, %v357
    %v359 = vpop.f32.mrb[0].mxu0
    %360 = vmatprep.mubr.bf16.mxu0 0
    %361 = vmatmul.mubr.bf16.gmra.mrb[0].mxu0 %v183
    %v362 = vpop.f32.mrb[0].mxu0
    %v363 = vadd.f32 0.0, %v362
    %v364 = vpop.f32.mrb[0].mxu0
    %v365 = vpop.f32.mrb[0].mxu0
    %v366 = vadd.f32 0.0, %v365
    %v367 = vpop.f32.mrb[0].mxu0
    %368 = vmatprep.mubr.bf16.mxu0 0
    %369 = vmatmul.mubr.bf16.gmra.mrb[0].mxu0 %v184
    %v370 = vpop.f32.mrb[0].mxu0
    %v371 = vadd.f32 0.0, %v370
    %v372 = vpop.f32.mrb[0].mxu0
    %v373 = vpop.f32.mrb[0].mxu0
    %v374 = vadd.f32 0.0, %v373
    %v375 = vpop.f32.mrb[0].mxu0
    %376 = vmatprep.mubr.bf16.mxu0 0
    %377 = vmatmul.mubr.bf16.gmra.mrb[0].mxu0 %v185
    %v378 = vpop.f32.mrb[0].mxu0
    %v379 = vadd.f32 0.0, %v378
    %v380 = vpop.f32.mrb[0].mxu0
    %v381 = vpop.f32.mrb[0].mxu0
    %v382 = vadd.f32 0.0, %v381
    %v383 = vpop.f32.mrb[0].mxu0
    %384 = vmatprep.mubr.bf16.mxu0 0
    %385 = vmatmul.mubr.bf16.gmra.mrb[0].mxu0 %v186
    %v386 = vpop.f32.mrb[0].mxu0
    %v387 = vadd.f32 0.0, %v386
    %v388 = vpop.f32.mrb[0].mxu0
    %v389 = vpop.f32.mrb[0].mxu0
    %v390 = vadd.f32 0.0, %v389
    %v391 = vpop.f32.mrb[0].mxu0
    %392 = vmatprep.mubr.bf16.mxu0 0
    %393 = vmatmul.mubr.bf16.gmra.mrb[0].mxu0 %v187
    %v394 = vpop.f32.mrb[0].mxu0
    %v395 = vadd.f32 0.0, %v394
    %v396 = vpop.f32.mrb[0].mxu0
    %v397 = vpop.f32.mrb[0].mxu0
    %v398 = vadd.f32 0.0, %v397
    %v399 = vpop.f32.mrb[0].mxu0
    %400 = vmatprep.mubr.bf16.mxu0 0
    %401 = vmatmul.mubr.bf16.gmra.mrb[0].mxu0 %v188
    %v402 = vpop.f32.mrb[0].mxu0
    %v403 = vadd.f32 0.0, %v402
    %v404 = vpop.f32.mrb[0].mxu0
    %v405 = vpop.f32.mrb[0].mxu0
    %v406 = vadd.f32 0.0, %v405
    %v407 = vpop.f32.mrb[0].mxu0
    %408 = vmatprep.mubr.bf16.mxu0 0
    %409 = vmatmul.mubr.bf16.gmra.mrb[0].mxu0 %v189
    %v410 = vpop.f32.mrb[0].mxu0
    %v411 = vadd.f32 0.0, %v410
    %v412 = vpop.f32.mrb[0].mxu0
    %v413 = vpop.f32.mrb[0].mxu0
    %v414 = vadd.f32 0.0, %v413
    %v415 = vpop.f32.mrb[0].mxu0
    %416 = vmatprep.mubr.bf16.mxu0 0
    %417 = vmatmul.mubr.bf16.gmra.mrb[0].mxu0 %v190
    %v418 = vpop.f32.mrb[0].mxu0
    %v419 = vadd.f32 0.0, %v418
    %v420 = vpop.f32.mrb[0].mxu0
    %v421 = vpop.f32.mrb[0].mxu0
    %v422 = vadd.f32 0.0, %v421
    %v423 = vpop.f32.mrb[0].mxu0
    %424 = vmatprep.mubr.bf16.mxu0 0
    %425 = vmatmul.mubr.bf16.gmra.mrb[0].mxu0 %v191
    %v426 = vpop.f32.mrb[0].mxu0
    %v427 = vadd.f32 0.0, %v426
    %v428 = vpop.f32.mrb[0].mxu0
    %v429 = vpop.f32.mrb[0].mxu0
    %v430 = vadd.f32 0.0, %v429
    %v431 = vpop.f32.mrb[0].mxu0
    %432 = vdwg.mxu0
    %v449 = vunpack.c.l.b16 %v192
    %v450 = vunpack.c.l.b16 %v193
    %v451 = vunpack.c.l.b16 %v194
    %v452 = vunpack.c.l.b16 %v195
    %v453 = vunpack.c.l.b16 %v196
    %v454 = vunpack.c.l.b16 %v197
    %v455 = vunpack.c.l.b16 %v198
    %v456 = vunpack.c.l.b16 %v199
    %v457 = vunpack.c.l.b16 %v200
    %v458 = vunpack.c.l.b16 %v201
    %v459 = vunpack.c.l.b16 %v202
    %v460 = vunpack.c.l.b16 %v203
    %v461 = vunpack.c.l.b16 %v204
    %v462 = vunpack.c.l.b16 %v205
    %v463 = vunpack.c.l.b16 %v206
    %v464 = vunpack.c.l.b16 %v207
    %v465 = vpack.c.b16 %v450, %v449
    %v466 = vpack.c.b16 %v452, %v451
    %v467 = vpack.c.b16 %v454, %v453
    %v468 = vpack.c.b16 %v456, %v455
    %v469 = vpack.c.b16 %v458, %v457
    %v470 = vpack.c.b16 %v460, %v459
    %v471 = vpack.c.b16 %v462, %v461
    %v472 = vpack.c.b16 %v464, %v463
    %481 = vmatprep.subr.bf16.mxu0 0
    %482 = vmatpush1.bf16.msra.mxu0 %v465
    %483 = vmatprep.subr.bf16.mxu0 0
    %484 = vmatpush1.bf16.msra.mxu0 %v466
    %485 = vmatprep.subr.bf16.mxu0 0
    %486 = vmatpush1.bf16.msra.mxu0 %v467
    %487 = vmatprep.subr.bf16.mxu0 0
    %488 = vmatpush1.bf16.msra.mxu0 %v468
    %489 = vmatprep.subr.bf16.mxu0 0
    %490 = vmatpush1.bf16.msra.mxu0 %v469
    %491 = vmatprep.subr.bf16.mxu0 0
    %492 = vmatpush1.bf16.msra.mxu0 %v470
    %493 = vmatprep.subr.bf16.mxu0 0
    %494 = vmatpush1.bf16.msra.mxu0 %v471
    %495 = vmatprep.subr.bf16.mxu0 0
    %496 = vmatpush1.bf16.msra.mxu0 %v472
    %497 = vmatprep.subr.bf16.mxu0 0
    %498 = vmatpush1.bf16.msra.mxu0 0
    %499 = vmatprep.subr.bf16.mxu0 0
    %500 = vmatpush1.bf16.msra.mxu0 0
    %501 = vmatprep.subr.bf16.mxu0 0
    %502 = vmatpush1.bf16.msra.mxu0 0
    %503 = vmatprep.subr.bf16.mxu0 0
    %504 = vmatpush1.bf16.msra.mxu0 0
    %505 = vmatprep.subr.bf16.mxu0 0
    %506 = vmatpush1.bf16.msra.mxu0 0
    %507 = vmatprep.subr.bf16.mxu0 0
    %508 = vmatpush1.bf16.msra.mxu0 0
    %509 = vmatprep.subr.bf16.mxu0 0
    %510 = vmatpush1.bf16.msra.mxu0 0
    %511 = vmatprep.subr.bf16.mxu0 0
    %512 = vmatpush1.bf16.msra.mxu0 0
    %513 = vmatprep.mubr.bf16.mxu0 0
    %514 = vmatmul.mubr.bf16.gmra.mrb[0].mxu0 %v128
    %v515 = vpop.f32.mrb[0].mxu0
    %v516 = vadd.f32 %v307, %v515
    %v517 = vpop.f32.mrb[0].mxu0
    %v518 = vpop.f32.mrb[0].mxu0
    %v519 = vadd.f32 %v310, %v518
    %v520 = vpop.f32.mrb[0].mxu0
    %521 = vmatprep.mubr.bf16.mxu0 0
    %522 = vmatmul.mubr.bf16.gmra.mrb[0].mxu0 %v129
    %v523 = vpop.f32.mrb[0].mxu0
    %v524 = vadd.f32 %v315, %v523
    %v525 = vpop.f32.mrb[0].mxu0
    %v526 = vpop.f32.mrb[0].mxu0
    %v527 = vadd.f32 %v318, %v526
    %v528 = vpop.f32.mrb[0].mxu0
    %529 = vmatprep.mubr.bf16.mxu0 0
    %530 = vmatmul.mubr.bf16.gmra.mrb[0].mxu0 %v130
    %v531 = vpop.f32.mrb[0].mxu0
    %v532 = vadd.f32 %v323, %v531
    %v533 = vpop.f32.mrb[0].mxu0
    %v534 = vpop.f32.mrb[0].mxu0
    %v535 = vadd.f32 %v326, %v534
    %v536 = vpop.f32.mrb[0].mxu0
    %537 = vmatprep.mubr.bf16.mxu0 0
    %538 = vmatmul.mubr.bf16.gmra.mrb[0].mxu0 %v131
    %v539 = vpop.f32.mrb[0].mxu0
    %v540 = vadd.f32 %v331, %v539
    %v541 = vpop.f32.mrb[0].mxu0
    %v542 = vpop.f32.mrb[0].mxu0
    %v543 = vadd.f32 %v334, %v542
    %v544 = vpop.f32.mrb[0].mxu0
    %545 = vmatprep.mubr.bf16.mxu0 0
    %546 = vmatmul.mubr.bf16.gmra.mrb[0].mxu0 %v132
    %v547 = vpop.f32.mrb[0].mxu0
    %v548 = vadd.f32 %v339, %v547
    %v549 = vpop.f32.mrb[0].mxu0
    %v550 = vpop.f32.mrb[0].mxu0
    %v551 = vadd.f32 %v342, %v550
    %v552 = vpop.f32.mrb[0].mxu0
    %553 = vmatprep.mubr.bf16.mxu0 0
    %554 = vmatmul.mubr.bf16.gmra.mrb[0].mxu0 %v133
    %v555 = vpop.f32.mrb[0].mxu0
    %v556 = vadd.f32 %v347, %v555
    %v557 = vpop.f32.mrb[0].mxu0
    %v558 = vpop.f32.mrb[0].mxu0
    %v559 = vadd.f32 %v350, %v558
    %v560 = vpop.f32.mrb[0].mxu0
    %561 = vmatprep.mubr.bf16.mxu0 0
    %562 = vmatmul.mubr.bf16.gmra.mrb[0].mxu0 %v134
    %v563 = vpop.f32.mrb[0].mxu0
    %v564 = vadd.f32 %v355, %v563
    %v565 = vpop.f32.mrb[0].mxu0
    %v566 = vpop.f32.mrb[0].mxu0
    %v567 = vadd.f32 %v358, %v566
    %v568 = vpop.f32.mrb[0].mxu0
    %569 = vmatprep.mubr.bf16.mxu0 0
    %570 = vmatmul.mubr.bf16.gmra.mrb[0].mxu0 %v135
    %v571 = vpop.f32.mrb[0].mxu0
    %v572 = vadd.f32 %v363, %v571
    %v573 = vpop.f32.mrb[0].mxu0
    %v574 = vpop.f32.mrb[0].mxu0
    %v575 = vadd.f32 %v366, %v574
    %v576 = vpop.f32.mrb[0].mxu0
    %577 = vmatprep.mubr.bf16.mxu0 0
    %578 = vmatmul.mubr.bf16.gmra.mrb[0].mxu0 %v136
    %v579 = vpop.f32.mrb[0].mxu0
    %v580 = vadd.f32 %v371, %v579
    %v581 = vpop.f32.mrb[0].mxu0
    %v582 = vpop.f32.mrb[0].mxu0
    %v583 = vadd.f32 %v374, %v582
    %v584 = vpop.f32.mrb[0].mxu0
    %585 = vmatprep.mubr.bf16.mxu0 0
    %586 = vmatmul.mubr.bf16.gmra.mrb[0].mxu0 %v137
    %v587 = vpop.f32.mrb[0].mxu0
    %v588 = vadd.f32 %v379, %v587
    %v589 = vpop.f32.mrb[0].mxu0
    %v590 = vpop.f32.mrb[0].mxu0
    %v591 = vadd.f32 %v382, %v590
    %v592 = vpop.f32.mrb[0].mxu0
    %593 = vmatprep.mubr.bf16.mxu0 0
    %594 = vmatmul.mubr.bf16.gmra.mrb[0].mxu0 %v138
    %v595 = vpop.f32.mrb[0].mxu0
    %v596 = vadd.f32 %v387, %v595
    %v597 = vpop.f32.mrb[0].mxu0
    %v598 = vpop.f32.mrb[0].mxu0
    %v599 = vadd.f32 %v390, %v598
    %v600 = vpop.f32.mrb[0].mxu0
    %601 = vmatprep.mubr.bf16.mxu0 0
    %602 = vmatmul.mubr.bf16.gmra.mrb[0].mxu0 %v139
    %v603 = vpop.f32.mrb[0].mxu0
    %v604 = vadd.f32 %v395, %v603
    %v605 = vpop.f32.mrb[0].mxu0
    %v606 = vpop.f32.mrb[0].mxu0
    %v607 = vadd.f32 %v398, %v606
    %v608 = vpop.f32.mrb[0].mxu0
    %609 = vmatprep.mubr.bf16.mxu0 0
    %610 = vmatmul.mubr.bf16.gmra.mrb[0].mxu0 %v140
    %v611 = vpop.f32.mrb[0].mxu0
    %v612 = vadd.f32 %v403, %v611
    %v613 = vpop.f32.mrb[0].mxu0
    %v614 = vpop.f32.mrb[0].mxu0
    %v615 = vadd.f32 %v406, %v614
    %v616 = vpop.f32.mrb[0].mxu0
    %617 = vmatprep.mubr.bf16.mxu0 0
    %618 = vmatmul.mubr.bf16.gmra.mrb[0].mxu0 %v141
    %v619 = vpop.f32.mrb[0].mxu0
    %v620 = vadd.f32 %v411, %v619
    %v621 = vpop.f32.mrb[0].mxu0
    %v622 = vpop.f32.mrb[0].mxu0
    %v623 = vadd.f32 %v414, %v622
    %v624 = vpop.f32.mrb[0].mxu0
    %625 = vmatprep.mubr.bf16.mxu0 0
    %626 = vmatmul.mubr.bf16.gmra.mrb[0].mxu0 %v142
    %v627 = vpop.f32.mrb[0].mxu0
    %v628 = vadd.f32 %v419, %v627
    %v629 = vpop.f32.mrb[0].mxu0
    %v630 = vpop.f32.mrb[0].mxu0
    %v631 = vadd.f32 %v422, %v630
    %v632 = vpop.f32.mrb[0].mxu0
    %633 = vmatprep.mubr.bf16.mxu0 0
    %634 = vmatmul.mubr.bf16.gmra.mrb[0].mxu0 %v143
    %v635 = vpop.f32.mrb[0].mxu0
    %v636 = vadd.f32 %v427, %v635
    %v637 = vpop.f32.mrb[0].mxu0
    %v638 = vpop.f32.mrb[0].mxu0
    %v639 = vadd.f32 %v430, %v638
    %v640 = vpop.f32.mrb[0].mxu0
    %641 = vdwg.mxu0
    %v642 = vld [vmem:[%s4] sm:$0x1]
    %v644 = vlaneseq
    %v645 = vshrl.u32 %v644, 7
    %v646 = vsub.s32 0, %v645
    %v647 = vrot.slane %v642, %v646
    %v649 = vadd.f32 %v516, %v647
    %v650 = vadd.f32 %v519, %v647
    %v651 = vadd.f32 %v524, %v647
    %v652 = vadd.f32 %v527, %v647
    %v653 = vadd.f32 %v532, %v647
    %v654 = vadd.f32 %v535, %v647
    %v655 = vadd.f32 %v540, %v647
    %v656 = vadd.f32 %v543, %v647
    %v657 = vadd.f32 %v548, %v647
    %v658 = vadd.f32 %v551, %v647
    %v659 = vadd.f32 %v556, %v647
    %v660 = vadd.f32 %v559, %v647
    %v661 = vadd.f32 %v564, %v647
    %v662 = vadd.f32 %v567, %v647
    %v663 = vadd.f32 %v572, %v647
    %v664 = vadd.f32 %v575, %v647
    %v665 = vadd.f32 %v580, %v647
    %v666 = vadd.f32 %v583, %v647
    %v667 = vadd.f32 %v588, %v647
    %v668 = vadd.f32 %v591, %v647
    %v669 = vadd.f32 %v596, %v647
    %v670 = vadd.f32 %v599, %v647
    %v671 = vadd.f32 %v604, %v647
    %v672 = vadd.f32 %v607, %v647
    %v673 = vadd.f32 %v612, %v647
    %v674 = vadd.f32 %v615, %v647
    %v675 = vadd.f32 %v620, %v647
    %v676 = vadd.f32 %v623, %v647
    %v677 = vadd.f32 %v628, %v647
    %v678 = vadd.f32 %v631, %v647
    %v679 = vadd.f32 %v636, %v647
    %v680 = vadd.f32 %v639, %v647
    %vm681 = vcmp.gt.f32.partialorder %v649, 0.0
    %vm682 = vcmp.gt.f32.partialorder %v650, 0.0
    %vm683 = vcmp.gt.f32.partialorder %v651, 0.0
    %vm684 = vcmp.gt.f32.partialorder %v652, 0.0
    %vm685 = vcmp.gt.f32.partialorder %v653, 0.0
    %vm686 = vcmp.gt.f32.partialorder %v654, 0.0
    %vm687 = vcmp.gt.f32.partialorder %v655, 0.0
    %vm688 = vcmp.gt.f32.partialorder %v656, 0.0
    %vm689 = vcmp.gt.f32.partialorder %v657, 0.0
    %vm690 = vcmp.gt.f32.partialorder %v658, 0.0
    %vm691 = vcmp.gt.f32.partialorder %v659, 0.0
    %vm692 = vcmp.gt.f32.partialorder %v660, 0.0
    %vm693 = vcmp.gt.f32.partialorder %v661, 0.0
    %vm694 = vcmp.gt.f32.partialorder %v662, 0.0
    %vm695 = vcmp.gt.f32.partialorder %v663, 0.0
    %vm696 = vcmp.gt.f32.partialorder %v664, 0.0
    %vm697 = vcmp.gt.f32.partialorder %v665, 0.0
    %vm698 = vcmp.gt.f32.partialorder %v666, 0.0
    %vm699 = vcmp.gt.f32.partialorder %v667, 0.0
    %vm700 = vcmp.gt.f32.partialorder %v668, 0.0
    %vm701 = vcmp.gt.f32.partialorder %v669, 0.0
    %vm702 = vcmp.gt.f32.partialorder %v670, 0.0
    %vm703 = vcmp.gt.f32.partialorder %v671, 0.0
    %vm704 = vcmp.gt.f32.partialorder %v672, 0.0
    %vm705 = vcmp.gt.f32.partialorder %v673, 0.0
    %vm706 = vcmp.gt.f32.partialorder %v674, 0.0
    %vm707 = vcmp.gt.f32.partialorder %v675, 0.0
    %vm708 = vcmp.gt.f32.partialorder %v676, 0.0
    %vm709 = vcmp.gt.f32.partialorder %v677, 0.0
    %vm710 = vcmp.gt.f32.partialorder %v678, 0.0
    %vm711 = vcmp.gt.f32.partialorder %v679, 0.0
    %vm712 = vcmp.gt.f32.partialorder %v680, 0.0
    %v713 = vmul.f32 %v649, 0.2
    %v714 = vmul.f32 %v650, 0.2
    %v715 = vmul.f32 %v651, 0.2
    %v716 = vmul.f32 %v652, 0.2
    %v717 = vmul.f32 %v653, 0.2
    %v718 = vmul.f32 %v654, 0.2
    %v719 = vmul.f32 %v655, 0.2
    %v720 = vmul.f32 %v656, 0.2
    %v721 = vmul.f32 %v657, 0.2
    %v722 = vmul.f32 %v658, 0.2
    %v723 = vmul.f32 %v659, 0.2
    %v724 = vmul.f32 %v660, 0.2
    %v725 = vmul.f32 %v661, 0.2
    %v726 = vmul.f32 %v662, 0.2
    %v727 = vmul.f32 %v663, 0.2
    %v728 = vmul.f32 %v664, 0.2
    %v729 = vmul.f32 %v665, 0.2
    %v730 = vmul.f32 %v666, 0.2
    %v731 = vmul.f32 %v667, 0.2
    %v732 = vmul.f32 %v668, 0.2
    %v733 = vmul.f32 %v669, 0.2
    %v734 = vmul.f32 %v670, 0.2
    %v735 = vmul.f32 %v671, 0.2
    %v736 = vmul.f32 %v672, 0.2
    %v737 = vmul.f32 %v673, 0.2
    %v738 = vmul.f32 %v674, 0.2
    %v739 = vmul.f32 %v675, 0.2
    %v740 = vmul.f32 %v676, 0.2
    %v741 = vmul.f32 %v677, 0.2
    %v742 = vmul.f32 %v678, 0.2
    %v743 = vmul.f32 %v679, 0.2
    %v744 = vmul.f32 %v680, 0.2
    %v745 = vsel %vm681, %v649, %v713
    %v746 = vsel %vm682, %v650, %v714
    %v747 = vsel %vm683, %v651, %v715
    %v748 = vsel %vm684, %v652, %v716
    %v749 = vsel %vm685, %v653, %v717
    %v750 = vsel %vm686, %v654, %v718
    %v751 = vsel %vm687, %v655, %v719
    %v752 = vsel %vm688, %v656, %v720
    %v753 = vsel %vm689, %v657, %v721
    %v754 = vsel %vm690, %v658, %v722
    %v755 = vsel %vm691, %v659, %v723
    %v756 = vsel %vm692, %v660, %v724
    %v757 = vsel %vm693, %v661, %v725
    %v758 = vsel %vm694, %v662, %v726
    %v759 = vsel %vm695, %v663, %v727
    %v760 = vsel %vm696, %v664, %v728
    %v761 = vsel %vm697, %v665, %v729
    %v762 = vsel %vm698, %v666, %v730
    %v763 = vsel %vm699, %v667, %v731
    %v764 = vsel %vm700, %v668, %v732
    %v765 = vsel %vm701, %v669, %v733
    %v766 = vsel %vm702, %v670, %v734
    %v767 = vsel %vm703, %v671, %v735
    %v768 = vsel %vm704, %v672, %v736
    %v769 = vsel %vm705, %v673, %v737
    %v770 = vsel %vm706, %v674, %v738
    %v771 = vsel %vm707, %v675, %v739
    %v772 = vsel %vm708, %v676, %v740
    %v773 = vsel %vm709, %v677, %v741
    %v774 = vsel %vm710, %v678, %v742
    %v775 = vsel %vm711, %v679, %v743
    %v776 = vsel %vm712, %v680, %v744
    %v777 = vpack.c.bf16 %v746, %v745
    %v778 = vpack.c.bf16 %v748, %v747
    %v779 = vpack.c.bf16 %v750, %v749
    %v780 = vpack.c.bf16 %v752, %v751
    %v781 = vpack.c.bf16 %v754, %v753
    %v782 = vpack.c.bf16 %v756, %v755
    %v783 = vpack.c.bf16 %v758, %v757
    %v784 = vpack.c.bf16 %v760, %v759
    %v785 = vpack.c.bf16 %v762, %v761
    %v786 = vpack.c.bf16 %v764, %v763
    %v787 = vpack.c.bf16 %v766, %v765
    %v788 = vpack.c.bf16 %v768, %v767
    %v789 = vpack.c.bf16 %v770, %v769
    %v790 = vpack.c.bf16 %v772, %v771
    %v791 = vpack.c.bf16 %v774, %v773
    %v792 = vpack.c.bf16 %v776, %v775
    %v793 = vld [vmem:[#allocation10] sm:$0xf]
    %v794 = vld [vmem:[#allocation10 + $0x4] sm:$0xf]
    %v795 = vld [vmem:[#allocation10 + $0x8] sm:$0xf]
    %v796 = vld [vmem:[#allocation10 + $0xc] sm:$0xf]
    %v797 = vld [vmem:[#allocation10 + $0x10] sm:$0xf]
    %v798 = vld [vmem:[#allocation10 + $0x14] sm:$0xf]
    %v799 = vld [vmem:[#allocation10 + $0x18] sm:$0xf]
    %v800 = vld [vmem:[#allocation10 + $0x1c] sm:$0xf]
    %v801 = vld [vmem:[#allocation10 + $0x20] sm:$0xf]
    %v802 = vld [vmem:[#allocation10 + $0x24] sm:$0xf]
    %v803 = vld [vmem:[#allocation10 + $0x28] sm:$0xf]
    %v804 = vld [vmem:[#allocation10 + $0x2c] sm:$0xf]
    %v805 = vld [vmem:[#allocation10 + $0x30] sm:$0xf]
    %v806 = vld [vmem:[#allocation10 + $0x34] sm:$0xf]
    %v807 = vld [vmem:[#allocation10 + $0x38] sm:$0xf]
    %v808 = vld [vmem:[#allocation10 + $0x3c] sm:$0xf]
    %v809 = vld [vmem:[%s6] sm:$0x1]
    %v811 = vlaneseq
    %v812 = vshrl.u32 %v811, 7
    %v813 = vsub.s32 0, %v812
    %v814 = vrot.slane %v809, %v813
    %v832 = vunpack.c.l.b16 %v793
    %v833 = vunpack.c.l.b16 %v794
    %v834 = vunpack.c.l.b16 %v795
    %v835 = vunpack.c.l.b16 %v796
    %v836 = vunpack.c.l.b16 %v797
    %v837 = vunpack.c.l.b16 %v798
    %v838 = vunpack.c.l.b16 %v799
    %v839 = vunpack.c.l.b16 %v800
    %v840 = vunpack.c.l.b16 %v801
    %v841 = vunpack.c.l.b16 %v802
    %v842 = vunpack.c.l.b16 %v803
    %v843 = vunpack.c.l.b16 %v804
    %v844 = vunpack.c.l.b16 %v805
    %v845 = vunpack.c.l.b16 %v806
    %v846 = vunpack.c.l.b16 %v807
    %v847 = vunpack.c.l.b16 %v808
    %v848 = vpack.c.b16 %v833, %v832
    %v849 = vpack.c.b16 %v835, %v834
    %v850 = vpack.c.b16 %v837, %v836
    %v851 = vpack.c.b16 %v839, %v838
    %v852 = vpack.c.b16 %v841, %v840
    %v853 = vpack.c.b16 %v843, %v842
    %v854 = vpack.c.b16 %v845, %v844
    %v855 = vpack.c.b16 %v847, %v846
    %864 = vmatprep.subr.bf16.mxu0 0
    %865 = vmatpush1.bf16.msra.mxu0 %v848
    %866 = vmatprep.subr.bf16.mxu0 0
    %867 = vmatpush1.bf16.msra.mxu0 %v849
    %868 = vmatprep.subr.bf16.mxu0 0
    %869 = vmatpush1.bf16.msra.mxu0 %v850
    %870 = vmatprep.subr.bf16.mxu0 0
    %871 = vmatpush1.bf16.msra.mxu0 %v851
    %872 = vmatprep.subr.bf16.mxu0 0
    %873 = vmatpush1.bf16.msra.mxu0 %v852
    %874 = vmatprep.subr.bf16.mxu0 0
    %875 = vmatpush1.bf16.msra.mxu0 %v853
    %876 = vmatprep.subr.bf16.mxu0 0
    %877 = vmatpush1.bf16.msra.mxu0 %v854
    %878 = vmatprep.subr.bf16.mxu0 0
    %879 = vmatpush1.bf16.msra.mxu0 %v855
    %880 = vmatprep.subr.bf16.mxu0 0
    %881 = vmatpush1.bf16.msra.mxu0 0
    %882 = vmatprep.subr.bf16.mxu0 0
    %883 = vmatpush1.bf16.msra.mxu0 0
    %884 = vmatprep.subr.bf16.mxu0 0
    %885 = vmatpush1.bf16.msra.mxu0 0
    %886 = vmatprep.subr.bf16.mxu0 0
    %887 = vmatpush1.bf16.msra.mxu0 0
    %888 = vmatprep.subr.bf16.mxu0 0
    %889 = vmatpush1.bf16.msra.mxu0 0
    %890 = vmatprep.subr.bf16.mxu0 0
    %891 = vmatpush1.bf16.msra.mxu0 0
    %892 = vmatprep.subr.bf16.mxu0 0
    %893 = vmatpush1.bf16.msra.mxu0 0
    %894 = vmatprep.subr.bf16.mxu0 0
    %895 = vmatpush1.bf16.msra.mxu0 0
    %896 = vmatprep.mubr.bf16.mxu0 0
    %897 = vmatmul.mubr.bf16.gmra.mrb[0].mxu0 %v777
    %v898 = vpop.f32.mrb[0].mxu0
    %v899 = vadd.f32 %v814, %v898
    %v900 = vpop.f32.mrb[0].mxu0
    %v901 = vpop.f32.mrb[0].mxu0
    %v902 = vadd.f32 %v814, %v901
    %v903 = vpop.f32.mrb[0].mxu0
    %904 = vmatprep.mubr.bf16.mxu0 0
    %905 = vmatmul.mubr.bf16.gmra.mrb[0].mxu0 %v778
    %v906 = vpop.f32.mrb[0].mxu0
    %v907 = vadd.f32 %v814, %v906
    %v908 = vpop.f32.mrb[0].mxu0
    %v909 = vpop.f32.mrb[0].mxu0
    %v910 = vadd.f32 %v814, %v909
    %v911 = vpop.f32.mrb[0].mxu0
    %912 = vmatprep.mubr.bf16.mxu0 0
    %913 = vmatmul.mubr.bf16.gmra.mrb[0].mxu0 %v779
    %v914 = vpop.f32.mrb[0].mxu0
    %v915 = vadd.f32 %v814, %v914
    %v916 = vpop.f32.mrb[0].mxu0
    %v917 = vpop.f32.mrb[0].mxu0
    %v918 = vadd.f32 %v814, %v917
    %v919 = vpop.f32.mrb[0].mxu0
    %920 = vmatprep.mubr.bf16.mxu0 0
    %921 = vmatmul.mubr.bf16.gmra.mrb[0].mxu0 %v780
    %v922 = vpop.f32.mrb[0].mxu0
    %v923 = vadd.f32 %v814, %v922
    %v924 = vpop.f32.mrb[0].mxu0
    %v925 = vpop.f32.mrb[0].mxu0
    %v926 = vadd.f32 %v814, %v925
    %v927 = vpop.f32.mrb[0].mxu0
    %928 = vmatprep.mubr.bf16.mxu0 0
    %929 = vmatmul.mubr.bf16.gmra.mrb[0].mxu0 %v781
    %v930 = vpop.f32.mrb[0].mxu0
    %v931 = vadd.f32 %v814, %v930
    %v932 = vpop.f32.mrb[0].mxu0
    %v933 = vpop.f32.mrb[0].mxu0
    %v934 = vadd.f32 %v814, %v933
    %v935 = vpop.f32.mrb[0].mxu0
    %936 = vmatprep.mubr.bf16.mxu0 0
    %937 = vmatmul.mubr.bf16.gmra.mrb[0].mxu0 %v782
    %v938 = vpop.f32.mrb[0].mxu0
    %v939 = vadd.f32 %v814, %v938
    %v940 = vpop.f32.mrb[0].mxu0
    %v941 = vpop.f32.mrb[0].mxu0
    %v942 = vadd.f32 %v814, %v941
    %v943 = vpop.f32.mrb[0].mxu0
    %944 = vmatprep.mubr.bf16.mxu0 0
    %945 = vmatmul.mubr.bf16.gmra.mrb[0].mxu0 %v783
    %v946 = vpop.f32.mrb[0].mxu0
    %v947 = vadd.f32 %v814, %v946
    %v948 = vpop.f32.mrb[0].mxu0
    %v949 = vpop.f32.mrb[0].mxu0
    %v950 = vadd.f32 %v814, %v949
    %v951 = vpop.f32.mrb[0].mxu0
    %952 = vmatprep.mubr.bf16.mxu0 0
    %953 = vmatmul.mubr.bf16.gmra.mrb[0].mxu0 %v784
    %v954 = vpop.f32.mrb[0].mxu0
    %v955 = vadd.f32 %v814, %v954
    %v956 = vpop.f32.mrb[0].mxu0
    %v957 = vpop.f32.mrb[0].mxu0
    %v958 = vadd.f32 %v814, %v957
    %v959 = vpop.f32.mrb[0].mxu0
    %960 = vmatprep.mubr.bf16.mxu0 0
    %961 = vmatmul.mubr.bf16.gmra.mrb[0].mxu0 %v785
    %v962 = vpop.f32.mrb[0].mxu0
    %v963 = vadd.f32 %v814, %v962
    %v964 = vpop.f32.mrb[0].mxu0
    %v965 = vpop.f32.mrb[0].mxu0
    %v966 = vadd.f32 %v814, %v965
    %v967 = vpop.f32.mrb[0].mxu0
    %968 = vmatprep.mubr.bf16.mxu0 0
    %969 = vmatmul.mubr.bf16.gmra.mrb[0].mxu0 %v786
    %v970 = vpop.f32.mrb[0].mxu0
    %v971 = vadd.f32 %v814, %v970
    %v972 = vpop.f32.mrb[0].mxu0
    %v973 = vpop.f32.mrb[0].mxu0
    %v974 = vadd.f32 %v814, %v973
    %v975 = vpop.f32.mrb[0].mxu0
    %976 = vmatprep.mubr.bf16.mxu0 0
    %977 = vmatmul.mubr.bf16.gmra.mrb[0].mxu0 %v787
    %v978 = vpop.f32.mrb[0].mxu0
    %v979 = vadd.f32 %v814, %v978
    %v980 = vpop.f32.mrb[0].mxu0
    %v981 = vpop.f32.mrb[0].mxu0
    %v982 = vadd.f32 %v814, %v981
    %v983 = vpop.f32.mrb[0].mxu0
    %984 = vmatprep.mubr.bf16.mxu0 0
    %985 = vmatmul.mubr.bf16.gmra.mrb[0].mxu0 %v788
    %v986 = vpop.f32.mrb[0].mxu0
    %v987 = vadd.f32 %v814, %v986
    %v988 = vpop.f32.mrb[0].mxu0
    %v989 = vpop.f32.mrb[0].mxu0
    %v990 = vadd.f32 %v814, %v989
    %v991 = vpop.f32.mrb[0].mxu0
    %992 = vmatprep.mubr.bf16.mxu0 0
    %993 = vmatmul.mubr.bf16.gmra.mrb[0].mxu0 %v789
    %v994 = vpop.f32.mrb[0].mxu0
    %v995 = vadd.f32 %v814, %v994
    %v996 = vpop.f32.mrb[0].mxu0
    %v997 = vpop.f32.mrb[0].mxu0
    %v998 = vadd.f32 %v814, %v997
    %v999 = vpop.f32.mrb[0].mxu0
    %1000 = vmatprep.mubr.bf16.mxu0 0
    %1001 = vmatmul.mubr.bf16.gmra.mrb[0].mxu0 %v790
    %v1002 = vpop.f32.mrb[0].mxu0
    %v1003 = vadd.f32 %v814, %v1002
    %v1004 = vpop.f32.mrb[0].mxu0
    %v1005 = vpop.f32.mrb[0].mxu0
    %v1006 = vadd.f32 %v814, %v1005
    %v1007 = vpop.f32.mrb[0].mxu0
    %1008 = vmatprep.mubr.bf16.mxu0 0
    %1009 = vmatmul.mubr.bf16.gmra.mrb[0].mxu0 %v791
    %v1010 = vpop.f32.mrb[0].mxu0
    %v1011 = vadd.f32 %v814, %v1010
    %v1012 = vpop.f32.mrb[0].mxu0
    %v1013 = vpop.f32.mrb[0].mxu0
    %v1014 = vadd.f32 %v814, %v1013
    %v1015 = vpop.f32.mrb[0].mxu0
    %1016 = vmatprep.mubr.bf16.mxu0 0
    %1017 = vmatmul.mubr.bf16.gmra.mrb[0].mxu0 %v792
    %v1018 = vpop.f32.mrb[0].mxu0
    %v1019 = vadd.f32 %v814, %v1018
    %v1020 = vpop.f32.mrb[0].mxu0
    %v1021 = vpop.f32.mrb[0].mxu0
    %v1022 = vadd.f32 %v814, %v1021
    %v1023 = vpop.f32.mrb[0].mxu0
    %1024 = vdwg.mxu0
    %1025 = vst [vmem:[#allocation11] sm:$0xff] %v899
    %1026 = vst [vmem:[#allocation11 + $0x8] sm:$0xff] %v902
    %1027 = vst [vmem:[#allocation11 + $0x10] sm:$0xff] %v907
    %1028 = vst [vmem:[#allocation11 + $0x18] sm:$0xff] %v910
    %1029 = vst [vmem:[#allocation11 + $0x20] sm:$0xff] %v915
    %1030 = vst [vmem:[#allocation11 + $0x28] sm:$0xff] %v918
    %1031 = vst [vmem:[#allocation11 + $0x30] sm:$0xff] %v923
    %1032 = vst [vmem:[#allocation11 + $0x38] sm:$0xff] %v926
    %1033 = vst [vmem:[#allocation11 + $0x40] sm:$0xff] %v931
    %1034 = vst [vmem:[#allocation11 + $0x48] sm:$0xff] %v934
    %1035 = vst [vmem:[#allocation11 + $0x50] sm:$0xff] %v939
    %1036 = vst [vmem:[#allocation11 + $0x58] sm:$0xff] %v942
    %1037 = vst [vmem:[#allocation11 + $0x60] sm:$0xff] %v947
    %1038 = vst [vmem:[#allocation11 + $0x68] sm:$0xff] %v950
    %1039 = vst [vmem:[#allocation11 + $0x70] sm:$0xff] %v955
    %1040 = vst [vmem:[#allocation11 + $0x78] sm:$0xff] %v958
    %1041 = vst [vmem:[#allocation11 + $0x80] sm:$0xff] %v963
    %1042 = vst [vmem:[#allocation11 + $0x88] sm:$0xff] %v966
    %1043 = vst [vmem:[#allocation11 + $0x90] sm:$0xff] %v971
    %1044 = vst [vmem:[#allocation11 + $0x98] sm:$0xff] %v974
    %1045 = vst [vmem:[#allocation11 + $0xa0] sm:$0xff] %v979
    %1046 = vst [vmem:[#allocation11 + $0xa8] sm:$0xff] %v982
    %1047 = vst [vmem:[#allocation11 + $0xb0] sm:$0xff] %v987
    %1048 = vst [vmem:[#allocation11 + $0xb8] sm:$0xff] %v990
    %1049 = vst [vmem:[#allocation11 + $0xc0] sm:$0xff] %v995
    %1050 = vst [vmem:[#allocation11 + $0xc8] sm:$0xff] %v998
    %1051 = vst [vmem:[#allocation11 + $0xd0] sm:$0xff] %v1003
    %1052 = vst [vmem:[#allocation11 + $0xd8] sm:$0xff] %v1006
    %1053 = vst [vmem:[#allocation11 + $0xe0] sm:$0xff] %v1011
    %1054 = vst [vmem:[#allocation11 + $0xe8] sm:$0xff] %v1014
    %1055 = vst [vmem:[#allocation11 + $0xf0] sm:$0xff] %v1019
    %1056 = vst [vmem:[#allocation11 + $0xf8] sm:$0xff] %v1022
    // Predicated region
    $region50: #{tpu_custom_call.1} parent=1 // pred_check
      _
    $region51: #{tpu_custom_call.1} parent=1 // pred_check_branch
      %1058 = sbr.rel (0) target = $region53
    $region52: #{tpu_custom_call.1} parent=1 // pred_region
      %s1060 = ssub.s32 4096, 4096
      %1061 = vsyncadd [#allocation4], %s1060
      %s1062 = sshll.u32 [#allocation11], 4
      %s1063 = int_to_ptr.vmem [resolvable:$true] %s1062
      %1068 = dma.vmem_to_hbm [thread:$0]  %s1063, 4096, %s7, [#allocation4], 128, 128, 8
    $region53: #{tpu_custom_call.1} parent=1 // pred_fallthru
      _
    // Predicated region
    $region54: #{tpu_custom_call.1} parent=1 // pred_check
      _
    $region55: #{tpu_custom_call.1} parent=1 // pred_check_branch
      %1070 = sbr.rel (0) target = $region57
    $region56: #{tpu_custom_call.1} parent=1 // pred_region
      %1071 = dma.done [#allocation4], 4096
    $region57: #{tpu_custom_call.1} parent=1 // pred_fallthru
      _
    %1072 = vsyncpa [#allocation3], 1
    %1073 = vsyncpa [#allocation6], 1
    %1074 = vsyncpa [#allocation9], 1
    %1075 = vsyncpa [#allocation4], 1

</llo_original>
